<compile_context>
chip_gen: v7x
topology: tpu7x:2x2x1
jax: 0.10.0
libtpu: 0.0.40
codegen_flags: <defaults>
</compile_context>

<pallas_src>
import jax
import jax.numpy as jnp
from jax.experimental import pallas as pl
from jax.experimental.pallas import tpu as pltpu


def _round_up(x, m):
    return ((x + m - 1) // m) * m


def expert_kernel(x_ref, wgu_ref, wd_ref, o_ref, acc_ref):
    """One (seq-tile i, intermediate-tile k) grid step.

    x_ref   : [tm, Hp]    bf16
    wgu_ref : [Hp, 2*ti]  bf16  ([gate_k | up_k] slices for this I-tile)
    wd_ref  : [ti, Hp]    bf16
    o_ref   : [tm, Hp]    output dtype
    acc_ref : [tm, Hp]    f32 accumulator (resident across the k axis)
    """
    k = pl.program_id(1)

    @pl.when(k == 0)
    def _():
        acc_ref[...] = jnp.zeros_like(acc_ref)

    ti = wd_ref.shape[0]
    x = x_ref[...]
    # Fused gate+up projection: one MXU pass, f32 accumulation.
    gu = jnp.dot(x, wgu_ref[...], preferred_element_type=jnp.float32)   # [tm, 2*ti]
    g = gu[:, :ti]
    u = gu[:, ti:]
    # SiLU in f32 (sigmoid goes to the EUP slot), downcast h once for the bf16 down-proj.
    h = (g * jax.nn.sigmoid(g)) * u                                     # [tm, ti] f32
    acc_ref[...] += jnp.dot(h.astype(wd_ref.dtype), wd_ref[...],
                            preferred_element_type=jnp.float32)         # [tm, Hp]

    @pl.when(k == pl.num_programs(1) - 1)
    def _():
        o_ref[...] = acc_ref[...].astype(o_ref.dtype)


def expert_forward(x, wg, wu, wd, *, tm=None, ti=None, compute_dtype=jnp.bfloat16):
    """x: [S, H]; wg/wu: [H, I]; wd: [I, H]  ->  [S, H] in x.dtype (mlp_bias=False)."""
    S, H = x.shape
    I = wg.shape[1]
    assert wg.shape == (H, I) and wu.shape == (H, I) and wd.shape == (I, H)

    # --- tile choices -------------------------------------------------------
    Hp = _round_up(H, 128)                       # lane-dense output / contraction dim
    if ti is None:
        ti = min(_round_up(I, 128), 512)         # intermediate tile (bounds VMEM + spill)
    ti = _round_up(ti, 128)
    Ip = _round_up(I, ti)
    nk = Ip // ti
    if tm is None:
        tm = 256 if S >= 256 else _round_up(S, 8)
    tm = _round_up(tm, 8)
    Sp = _round_up(S, tm)

    # --- pad + pack (trace-time JAX; zero padding keeps the math exact) ------
    xp = jnp.zeros((Sp, Hp), compute_dtype).at[:S, :H].set(x.astype(compute_dtype))
    wg_p = jnp.zeros((Hp, Ip), compute_dtype).at[:H, :I].set(wg.astype(compute_dtype))
    wu_p = jnp.zeros((Hp, Ip), compute_dtype).at[:H, :I].set(wu.astype(compute_dtype))
    wd_p = jnp.zeros((Ip, Hp), compute_dtype).at[:I, :H].set(wd.astype(compute_dtype))
    # Fuse gate+up so each I-tile is one [Hp, 2*ti] block: [gate_k | up_k].
    wgu_p = jnp.concatenate(
        [wg_p.reshape(Hp, nk, ti), wu_p.reshape(Hp, nk, ti)], axis=-1
    ).reshape(Hp, nk * 2 * ti)

    grid = (Sp // tm, nk)

    # --- VMEM budget (double-buffered inputs/outputs + f32 accumulator) ------
    cb = jnp.dtype(compute_dtype).itemsize
    vmem_bytes = (
        2 * tm * Hp * cb             # x tiles
        + 2 * Hp * 2 * ti * cb       # fused gate/up weight tiles
        + 2 * ti * Hp * cb           # down-proj weight tiles
        + 2 * tm * Hp * x.dtype.itemsize   # output tiles
        + tm * Hp * 4                # f32 accumulator scratch
    )
    vmem_limit = int(min(max(2 * vmem_bytes + (4 << 20), 32 << 20), 120 << 20))

    out = pl.pallas_call(
        expert_kernel,
        out_shape=jax.ShapeDtypeStruct((Sp, Hp), x.dtype),
        grid_spec=pltpu.PrefetchScalarGridSpec(
            num_scalar_prefetch=0,
            grid=grid,
            in_specs=[
                pl.BlockSpec((tm, Hp), lambda i, k: (i, 0)),       # x tile
                pl.BlockSpec((Hp, 2 * ti), lambda i, k: (0, k)),   # [gate|up] weight tile
                pl.BlockSpec((ti, Hp), lambda i, k: (k, 0)),       # down weight tile
            ],
            out_specs=pl.BlockSpec((tm, Hp), lambda i, k: (i, 0)),
            scratch_shapes=[pltpu.VMEM((tm, Hp), jnp.float32)],
        ),
        compiler_params=pltpu.CompilerParams(
            dimension_semantics=("parallel", "arbitrary"),
            vmem_limit_bytes=vmem_limit,
        ),
    )(xp, wgu_p, wd_p)

    return out[:S, :H]


def expert_reference(x, wg, wu, wd):
    g = x @ wg
    u = x @ wu
    return (jax.nn.silu(g) * u) @ wd


if __name__ == "__main__":
    # config: hidden_size=32, intermediate_size=64, mlp_bias=False, seq_true=8
    S, H, I = 8, 32, 64
    key = jax.random.PRNGKey(0)
    kx, kg, ku, kd = jax.random.split(key, 4)

    x = jax.random.normal(kx, (S, H), dtype=jnp.float32)
    # PyTorch nn.Linear weights are [out, in]; generate then transpose to [in, out]
    w_gate = jax.random.normal(kg, (I, H), dtype=jnp.float32) * 0.05
    w_up = jax.random.normal(ku, (I, H), dtype=jnp.float32) * 0.05
    w_down = jax.random.normal(kd, (H, I), dtype=jnp.float32) * 0.05

    wg = w_gate.T   # [H, I]
    wu = w_up.T     # [H, I]
    wd = w_down.T   # [I, H]

    out = expert_forward(x, wg, wu, wd)
    out = jax.block_until_ready(out)

    ref = expert_reference(x, wg, wu, wd)
    assert out.shape == (S, H)
    # bf16 matmuls with f32 accumulation: compare with matching tolerance
    assert jnp.allclose(out, ref, atol=1e-2, rtol=1e-2), "mismatch vs reference"

    print("KERNEL_OK")
</pallas_src>

<mosaic_0001>
module attributes {stable_mosaic.version = 11 : i64} {
  func.func @expert_kernel(%arg0: i32, %arg1: i32, %arg2: memref<8x128xbf16, #tpu.memory_space<vmem>>, %arg3: memref<128x256xbf16, #tpu.memory_space<vmem>>, %arg4: memref<128x128xbf16, #tpu.memory_space<vmem>>, %arg5: memref<8x128xf32, #tpu.memory_space<vmem>>, %arg6: memref<8x128xf32, #tpu.memory_space<vmem>>) attributes {dimension_semantics = [#tpu.dimension_semantics<parallel>, #tpu.dimension_semantics<arbitrary>], iteration_bounds = array<i64: 1, 1>, scalar_prefetch = 0 : i64, scratch_operands = 1 : i64, tpu.core_type = #tpu.core_type<tc>, window_params = [{transform_indices = @transform_0, window_bounds = array<i64: 8, 128>}, {transform_indices = @transform_1, window_bounds = array<i64: 128, 256>}, {transform_indices = @transform_2, window_bounds = array<i64: 128, 128>}, {transform_indices = @transform_3, window_bounds = array<i64: 8, 128>}]} {
    %c0_i32 = arith.constant 0 : i32
    %0 = arith.cmpi eq, %arg1, %c0_i32 : i32
    %1 = arith.extui %0 : i1 to i32
    %c0_i32_0 = arith.constant 0 : i32
    %2 = arith.cmpi ne, %1, %c0_i32_0 : i32
    scf.if %2 {
      %cst_14 = arith.constant 0.000000e+00 : f32
      %24 = vector.broadcast %cst_14 : f32 to vector<8x128xf32>
      %c0_15 = arith.constant 0 : index
      %c0_16 = arith.constant 0 : index
      %25 = vector.load %arg6[%c0_15, %c0_16] : memref<8x128xf32, #tpu.memory_space<vmem>>, vector<8x128xf32>
      tpu.vector_store %arg6[%c0_15, %c0_16], %24 {strides = array<i32>} : memref<8x128xf32, #tpu.memory_space<vmem>>, vector<8x128xf32>,
    } else {
    }
    %c0 = arith.constant 0 : index
    %c0_1 = arith.constant 0 : index
    %3 = vector.load %arg2[%c0, %c0_1] : memref<8x128xbf16, #tpu.memory_space<vmem>>, vector<8x128xbf16>
    %c0_2 = arith.constant 0 : index
    %c0_3 = arith.constant 0 : index
    %4 = vector.load %arg3[%c0_2, %c0_3] : memref<128x256xbf16, #tpu.memory_space<vmem>>, vector<128x256xbf16>
    %cst = arith.constant dense<0.000000e+00> : vector<8x256xf32>
    %5 = tpu.matmul %3, %4, %cst {dimension_numbers = #tpu.dot_dimension_numbers<[1], [0], [0], [1], [0, 0, 1, 1], [], []>} : vector<8x128xbf16>, vector<128x256xbf16>, vector<8x256xf32> -> vector<8x256xf32>
    %6 = vector.extract_strided_slice %5 {offsets = [0, 0], sizes = [8, 128], strides = [1, 1]} : vector<8x256xf32> to vector<8x128xf32>
    %7 = vector.extract_strided_slice %5 {offsets = [0, 128], sizes = [8, 128], strides = [1, 1]} : vector<8x256xf32> to vector<8x128xf32>
    %8 = arith.negf %6 : vector<8x128xf32>
    %9 = math.exp %8 : vector<8x128xf32>
    %cst_4 = arith.constant 1.000000e+00 : f32
    %10 = vector.broadcast %cst_4 : f32 to vector<8x128xf32>
    %11 = arith.addf %10, %9 : vector<8x128xf32>
    %12 = arith.divf %10, %11 : vector<8x128xf32>
    %13 = arith.mulf %6, %12 : vector<8x128xf32>
    %14 = arith.mulf %13, %7 : vector<8x128xf32>
    %c0_5 = arith.constant 0 : index
    %c0_6 = arith.constant 0 : index
    %15 = vector.load %arg6[%c0_5, %c0_6] : memref<8x128xf32, #tpu.memory_space<vmem>>, vector<8x128xf32>
    %16 = arith.truncf %14 : vector<8x128xf32> to vector<8x128xbf16>
    %c0_7 = arith.constant 0 : index
    %c0_8 = arith.constant 0 : index
    %17 = vector.load %arg4[%c0_7, %c0_8] : memref<128x128xbf16, #tpu.memory_space<vmem>>, vector<128x128xbf16>
    %cst_9 = arith.constant dense<0.000000e+00> : vector<8x128xf32>
    %18 = tpu.matmul %16, %17, %cst_9 {dimension_numbers = #tpu.dot_dimension_numbers<[1], [0], [0], [1], [0, 0, 1, 1], [], []>} : vector<8x128xbf16>, vector<128x128xbf16>, vector<8x128xf32> -> vector<8x128xf32>
    %19 = arith.addf %15, %18 : vector<8x128xf32>
    %c0_10 = arith.constant 0 : index
    %c0_11 = arith.constant 0 : index
    %20 = vector.load %arg6[%c0_10, %c0_11] : memref<8x128xf32, #tpu.memory_space<vmem>>, vector<8x128xf32>
    tpu.vector_store %arg6[%c0_10, %c0_11], %19 {strides = array<i32>} : memref<8x128xf32, #tpu.memory_space<vmem>>, vector<8x128xf32>,
    %c0_i32_12 = arith.constant 0 : i32
    %21 = arith.cmpi eq, %arg1, %c0_i32_12 : i32
    %22 = arith.extui %21 : i1 to i32
    %c0_i32_13 = arith.constant 0 : i32
    %23 = arith.cmpi ne, %22, %c0_i32_13 : i32
    scf.if %23 {
      %c0_14 = arith.constant 0 : index
      %c0_15 = arith.constant 0 : index
      %24 = vector.load %arg6[%c0_14, %c0_15] : memref<8x128xf32, #tpu.memory_space<vmem>>, vector<8x128xf32>
      %c0_16 = arith.constant 0 : index
      %c0_17 = arith.constant 0 : index
      %25 = vector.load %arg5[%c0_16, %c0_17] : memref<8x128xf32, #tpu.memory_space<vmem>>, vector<8x128xf32>
      tpu.vector_store %arg5[%c0_16, %c0_17], %24 {strides = array<i32>} : memref<8x128xf32, #tpu.memory_space<vmem>>, vector<8x128xf32>,
    } else {
    }
    return
  }
  func.func @transform_0(%arg0: i32, %arg1: i32) -> (i32, i32) {
    %c0_i32 = arith.constant 0 : i32
    %c0_i32_0 = arith.constant 0 : i32
    return %arg0, %c0_i32 : i32, i32
  }
  func.func @transform_1(%arg0: i32, %arg1: i32) -> (i32, i32) {
    %c0_i32 = arith.constant 0 : i32
    %c0_i32_0 = arith.constant 0 : i32
    return %c0_i32, %arg1 : i32, i32
  }
  func.func @transform_2(%arg0: i32, %arg1: i32) -> (i32, i32) {
    %c0_i32 = arith.constant 0 : i32
    %c0_i32_0 = arith.constant 0 : i32
    return %arg1, %c0_i32 : i32, i32
  }
  func.func @transform_3(%arg0: i32, %arg1: i32) -> (i32, i32) {
    %c0_i32 = arith.constant 0 : i32
    %c0_i32_0 = arith.constant 0 : i32
    return %arg0, %c0_i32 : i32, i32
  }
}

</mosaic_0001>

<llo_original>
// kernel: tpu_custom_call.1
$region0: #{tpu_custom_call.1}
  #allocation0 [shape = 'u32[]', space=smem, size = 0x4, offset = 0x4, fixed_abs, tag = 'smem constant byte address 0x4 - core index']
  #allocation1 [shape = 'u32[144,128]{1,0:T(1,128)}', space=vmem, size = 0x12000, scoped, tag = 'internal scratch']
  #allocation2 [shape = 'f32[8,128]{1,0:T(8,128)}', space=vmem, size = 0x1000, scoped, tag = 'scratch operand']
  %s0 = inlined_call_operand.hbm [shape: bf16[8,128], index: 0, kind: input, shape index: {}]
  %s1 = inlined_call_operand.hbm [shape: bf16[128,256], index: 1, kind: input, shape index: {}]
  %s2 = inlined_call_operand.hbm [shape: bf16[128,128], index: 2, kind: input, shape index: {}]
  %s3 = inlined_call_operand.hbm [shape: f32[8,128], index: 3, kind: output, shape index: {}]
  %s4 = sld [smem:[#allocation0]]
  $region42: #{tpu_custom_call.1} parent=0
    _
  %s6 = ssub.s32 1, %s4
  %s7 = scalar_select 0, %s6, %s4
  $region1: #{tpu_custom_call.1} parent=0
    #allocation3 [shape = 'u8[2048]{0}', space=vmem, size = 0x800, scoped, tag = 'input window, operand 0, single buffered']
    #allocation4 [shape = 's32[1]{0}', space=sflag, size = 0x4, scoped, tag = 'scoped memory for tpu_custom_call.1']
    #allocation5 [shape = 's32[1]{0}', space=sflag, size = 0x4, scoped, tag = 'scoped memory for tpu_custom_call.1']
    #allocation6 [shape = 'u8[65536]{0}', space=vmem, size = 0x10000, scoped, tag = 'input window, operand 1, single buffered']
    #allocation7 [shape = 's32[1]{0}', space=sflag, size = 0x4, scoped, tag = 'scoped memory for tpu_custom_call.1']
    #allocation8 [shape = 'u8[32768]{0}', space=vmem, size = 0x8000, scoped, tag = 'input window, operand 2, single buffered']
    #allocation9 [shape = 'u8[4096]{0}', space=vmem, size = 0x1000, scoped, tag = 'output window, operand 0, single buffered']
    %8 = vsyncpa [#allocation4], 0
    %9 = vsyncpa [#allocation7], 0
    %10 = vsyncpa [#allocation5], 0
    // Predicated region
    $region2: #{tpu_custom_call.1} parent=1 // pred_check
      _
    $region3: #{tpu_custom_call.1} parent=1 // pred_check_branch
      %12 = sbr.rel (0) target = $region5
    $region4: #{tpu_custom_call.1} parent=1 // pred_region
      %s14 = ssub.s32 64, 64
      %15 = vsyncadd [#allocation4], %s14
      %s17 = sshll.u32 [#allocation3], 4
      %s18 = int_to_ptr.vmem [resolvable:$true] %s17
      %20 = dma.hbm_to_vmem [thread:$0]  %s0, 64, %s18, [#allocation4]
    $region5: #{tpu_custom_call.1} parent=1 // pred_fallthru
      _
    // Predicated region
    $region6: #{tpu_custom_call.1} parent=1 // pred_check
      _
    $region7: #{tpu_custom_call.1} parent=1 // pred_check_branch
      %22 = sbr.rel (0) target = $region9
    $region8: #{tpu_custom_call.1} parent=1 // pred_region
      %s24 = ssub.s32 2048, 2048
      %25 = vsyncadd [#allocation7], %s24
      %s26 = sshll.u32 [#allocation6], 4
      %s27 = int_to_ptr.vmem [resolvable:$true] %s26
      %32 = dma.hbm_to_vmem [thread:$0]  %s1, 2048, %s27, [#allocation7], 128, 128, 8
    $region9: #{tpu_custom_call.1} parent=1 // pred_fallthru
      _
    // Predicated region
    $region10: #{tpu_custom_call.1} parent=1 // pred_check
      _
    $region11: #{tpu_custom_call.1} parent=1 // pred_check_branch
      %34 = sbr.rel (0) target = $region13
    $region12: #{tpu_custom_call.1} parent=1 // pred_region
      %s36 = ssub.s32 1024, 1024
      %37 = vsyncadd [#allocation7], %s36
      %s38 = sshll.u32 [#allocation8], 4
      %s39 = int_to_ptr.vmem [resolvable:$true] %s38
      %44 = dma.hbm_to_vmem [thread:$0]  %s2, 1024, %s39, [#allocation7], 64, 64, 4
    $region13: #{tpu_custom_call.1} parent=1 // pred_fallthru
      _
    // Predicated region
    $region14: #{tpu_custom_call.1} parent=1 // pred_check
      _
    $region15: #{tpu_custom_call.1} parent=1 // pred_check_branch
      %46 = sbr.rel (0) target = $region17
    $region16: #{tpu_custom_call.1} parent=1 // pred_region
      %47 = dma.done [#allocation4], 64
    $region17: #{tpu_custom_call.1} parent=1 // pred_fallthru
      _
    // Predicated region
    $region18: #{tpu_custom_call.1} parent=1 // pred_check
      _
    $region19: #{tpu_custom_call.1} parent=1 // pred_check_branch
      %49 = sbr.rel (0) target = $region21
    $region20: #{tpu_custom_call.1} parent=1 // pred_region
      %50 = dma.done [#allocation7], 2048
    $region21: #{tpu_custom_call.1} parent=1 // pred_fallthru
      _
    // Predicated region
    $region22: #{tpu_custom_call.1} parent=1 // pred_check
      _
    $region23: #{tpu_custom_call.1} parent=1 // pred_check_branch
      %52 = sbr.rel (0) target = $region25
    $region24: #{tpu_custom_call.1} parent=1 // pred_region
      %53 = dma.done [#allocation7], 1024
    $region25: #{tpu_custom_call.1} parent=1 // pred_fallthru
      _
    %p55 = scmp.eq.s32.totalorder 0, 0
    // Predicated region
    $region26: #{tpu_custom_call.1} parent=1 // pred_check
      %p56 = pneg %p55
    $region27: #{tpu_custom_call.1} parent=1 // pred_check_branch
      %58 = sbr.rel (%p56) target = $region29
    $region28: #{tpu_custom_call.1} parent=1 // pred_region
      %59 = vst [vmem:[#allocation2] sm:$0xff] 0.0
    $region29: #{tpu_custom_call.1} parent=1 // pred_fallthru
      _
    %v60 = vld [vmem:[#allocation3] sm:$0xf]
    %v61 = vld [vmem:[#allocation6] sm:$0xff]
    %v62 = vld [vmem:[#allocation6 + $0x8] sm:$0xff]
    %v63 = vld [vmem:[#allocation6 + $0x10] sm:$0xff]
    %v64 = vld [vmem:[#allocation6 + $0x18] sm:$0xff]
    %v65 = vld [vmem:[#allocation6 + $0x20] sm:$0xff]
    %v66 = vld [vmem:[#allocation6 + $0x28] sm:$0xff]
    %v67 = vld [vmem:[#allocation6 + $0x30] sm:$0xff]
    %v68 = vld [vmem:[#allocation6 + $0x38] sm:$0xff]
    %v69 = vld [vmem:[#allocation6 + $0x40] sm:$0xff]
    %v70 = vld [vmem:[#allocation6 + $0x48] sm:$0xff]
    %v71 = vld [vmem:[#allocation6 + $0x50] sm:$0xff]
    %v72 = vld [vmem:[#allocation6 + $0x58] sm:$0xff]
    %v73 = vld [vmem:[#allocation6 + $0x60] sm:$0xff]
    %v74 = vld [vmem:[#allocation6 + $0x68] sm:$0xff]
    %v75 = vld [vmem:[#allocation6 + $0x70] sm:$0xff]
    %v76 = vld [vmem:[#allocation6 + $0x78] sm:$0xff]
    %v93 = vunpack.c.l.b16 %v61
    %v94 = vunpack.c.h.b16 %v61
    %v95 = vunpack.c.l.b16 %v62
    %v96 = vunpack.c.h.b16 %v62
    %v97 = vunpack.c.l.b16 %v63
    %v98 = vunpack.c.h.b16 %v63
    %v99 = vunpack.c.l.b16 %v64
    %v100 = vunpack.c.h.b16 %v64
    %v101 = vunpack.c.l.b16 %v65
    %v102 = vunpack.c.h.b16 %v65
    %v103 = vunpack.c.l.b16 %v66
    %v104 = vunpack.c.h.b16 %v66
    %v105 = vunpack.c.l.b16 %v67
    %v106 = vunpack.c.h.b16 %v67
    %v107 = vunpack.c.l.b16 %v68
    %v108 = vunpack.c.h.b16 %v68
    %v109 = vunpack.c.l.b16 %v69
    %v110 = vunpack.c.h.b16 %v69
    %v111 = vunpack.c.l.b16 %v70
    %v112 = vunpack.c.h.b16 %v70
    %v113 = vunpack.c.l.b16 %v71
    %v114 = vunpack.c.h.b16 %v71
    %v115 = vunpack.c.l.b16 %v72
    %v116 = vunpack.c.h.b16 %v72
    %v117 = vunpack.c.l.b16 %v73
    %v118 = vunpack.c.h.b16 %v73
    %v119 = vunpack.c.l.b16 %v74
    %v120 = vunpack.c.h.b16 %v74
    %v121 = vunpack.c.l.b16 %v75
    %v122 = vunpack.c.h.b16 %v75
    %v123 = vunpack.c.l.b16 %v76
    %v124 = vunpack.c.h.b16 %v76
    %v125 = vpack.c.b16 %v95, %v93
    %v126 = vpack.c.b16 %v96, %v94
    %v127 = vpack.c.b16 %v99, %v97
    %v128 = vpack.c.b16 %v100, %v98
    %v129 = vpack.c.b16 %v103, %v101
    %v130 = vpack.c.b16 %v104, %v102
    %v131 = vpack.c.b16 %v107, %v105
    %v132 = vpack.c.b16 %v108, %v106
    %v133 = vpack.c.b16 %v111, %v109
    %v134 = vpack.c.b16 %v112, %v110
    %v135 = vpack.c.b16 %v115, %v113
    %v136 = vpack.c.b16 %v116, %v114
    %v137 = vpack.c.b16 %v119, %v117
    %v138 = vpack.c.b16 %v120, %v118
    %v139 = vpack.c.b16 %v123, %v121
    %v140 = vpack.c.b16 %v124, %v122
    %157 = vmatprep.subr.bf16.mxu0 %v126
    %158 = vmatpush1.bf16.msra.mxu0 %v125
    %159 = vmatprep.subr.bf16.mxu0 %v128
    %160 = vmatpush1.bf16.msra.mxu0 %v127
    %161 = vmatprep.subr.bf16.mxu0 %v130
    %162 = vmatpush1.bf16.msra.mxu0 %v129
    %163 = vmatprep.subr.bf16.mxu0 %v132
    %164 = vmatpush1.bf16.msra.mxu0 %v131
    %165 = vmatprep.subr.bf16.mxu0 %v134
    %166 = vmatpush1.bf16.msra.mxu0 %v133
    %167 = vmatprep.subr.bf16.mxu0 %v136
    %168 = vmatpush1.bf16.msra.mxu0 %v135
    %169 = vmatprep.subr.bf16.mxu0 %v138
    %170 = vmatpush1.bf16.msra.mxu0 %v137
    %171 = vmatprep.subr.bf16.mxu0 %v140
    %172 = vmatpush1.bf16.msra.mxu0 %v139
    %173 = vmatprep.subr.bf16.mxu0 0
    %174 = vmatpush1.bf16.msra.mxu0 0
    %175 = vmatprep.subr.bf16.mxu0 0
    %176 = vmatpush1.bf16.msra.mxu0 0
    %177 = vmatprep.subr.bf16.mxu0 0
    %178 = vmatpush1.bf16.msra.mxu0 0
    %179 = vmatprep.subr.bf16.mxu0 0
    %180 = vmatpush1.bf16.msra.mxu0 0
    %181 = vmatprep.subr.bf16.mxu0 0
    %182 = vmatpush1.bf16.msra.mxu0 0
    %183 = vmatprep.subr.bf16.mxu0 0
    %184 = vmatpush1.bf16.msra.mxu0 0
    %185 = vmatprep.subr.bf16.mxu0 0
    %186 = vmatpush1.bf16.msra.mxu0 0
    %187 = vmatprep.subr.bf16.mxu0 0
    %188 = vmatpush1.bf16.msra.mxu0 0
    %189 = vmatprep.mubr.bf16.mxu0 0
    %190 = vmatmul.mubr.bf16.gmra.mrb[0].mxu0 %v60
    %v191 = vpop.f32.mrb[0].mxu0
    %v192 = vadd.f32 0.0, %v191
    %v193 = vpop.f32.mrb[0].mxu0
    %v194 = vadd.f32 0.0, %v193
    %v195 = vpop.f32.mrb[0].mxu0
    %v196 = vpop.f32.mrb[0].mxu0
    %197 = vdwg.mxu0
    %v198 = vxor.u32 %v192, 2147483648
    %v199 = vmul.f32 %v198, 1.442695
    %v200 = vpow.pop %v199
    %v201 = vadd.f32 %v200, 1.0
    %v202 = vrcp.pop %v201
    %v203 = vmul.f32 1.0, %v202
    %v204 = vmul.f32 %v192, %v203
    %v205 = vmul.f32 %v204, %v194
    %v206 = vld [vmem:[#allocation2] sm:$0xff]
    %v207 = vpack.c.bf16 %v205, %v205
    %v208 = vld [vmem:[#allocation8] sm:$0xf]
    %v209 = vld [vmem:[#allocation8 + $0x4] sm:$0xf]
    %v210 = vld [vmem:[#allocation8 + $0x8] sm:$0xf]
    %v211 = vld [vmem:[#allocation8 + $0xc] sm:$0xf]
    %v212 = vld [vmem:[#allocation8 + $0x10] sm:$0xf]
    %v213 = vld [vmem:[#allocation8 + $0x14] sm:$0xf]
    %v214 = vld [vmem:[#allocation8 + $0x18] sm:$0xf]
    %v215 = vld [vmem:[#allocation8 + $0x1c] sm:$0xf]
    %v216 = vld [vmem:[#allocation8 + $0x20] sm:$0xf]
    %v217 = vld [vmem:[#allocation8 + $0x24] sm:$0xf]
    %v218 = vld [vmem:[#allocation8 + $0x28] sm:$0xf]
    %v219 = vld [vmem:[#allocation8 + $0x2c] sm:$0xf]
    %v220 = vld [vmem:[#allocation8 + $0x30] sm:$0xf]
    %v221 = vld [vmem:[#allocation8 + $0x34] sm:$0xf]
    %v222 = vld [vmem:[#allocation8 + $0x38] sm:$0xf]
    %v223 = vld [vmem:[#allocation8 + $0x3c] sm:$0xf]
    %v240 = vunpack.c.l.b16 %v208
    %v241 = vunpack.c.l.b16 %v209
    %v242 = vunpack.c.l.b16 %v210
    %v243 = vunpack.c.l.b16 %v211
    %v244 = vunpack.c.l.b16 %v212
    %v245 = vunpack.c.l.b16 %v213
    %v246 = vunpack.c.l.b16 %v214
    %v247 = vunpack.c.l.b16 %v215
    %v248 = vunpack.c.l.b16 %v216
    %v249 = vunpack.c.l.b16 %v217
    %v250 = vunpack.c.l.b16 %v218
    %v251 = vunpack.c.l.b16 %v219
    %v252 = vunpack.c.l.b16 %v220
    %v253 = vunpack.c.l.b16 %v221
    %v254 = vunpack.c.l.b16 %v222
    %v255 = vunpack.c.l.b16 %v223
    %v256 = vpack.c.b16 %v241, %v240
    %v257 = vpack.c.b16 %v243, %v242
    %v258 = vpack.c.b16 %v245, %v244
    %v259 = vpack.c.b16 %v247, %v246
    %v260 = vpack.c.b16 %v249, %v248
    %v261 = vpack.c.b16 %v251, %v250
    %v262 = vpack.c.b16 %v253, %v252
    %v263 = vpack.c.b16 %v255, %v254
    %272 = vmatprep.subr.bf16.mxu0 0
    %273 = vmatpush1.bf16.msra.mxu0 %v256
    %274 = vmatprep.subr.bf16.mxu0 0
    %275 = vmatpush1.bf16.msra.mxu0 %v257
    %276 = vmatprep.subr.bf16.mxu0 0
    %277 = vmatpush1.bf16.msra.mxu0 %v258
    %278 = vmatprep.subr.bf16.mxu0 0
    %279 = vmatpush1.bf16.msra.mxu0 %v259
    %280 = vmatprep.subr.bf16.mxu0 0
    %281 = vmatpush1.bf16.msra.mxu0 %v260
    %282 = vmatprep.subr.bf16.mxu0 0
    %283 = vmatpush1.bf16.msra.mxu0 %v261
    %284 = vmatprep.subr.bf16.mxu0 0
    %285 = vmatpush1.bf16.msra.mxu0 %v262
    %286 = vmatprep.subr.bf16.mxu0 0
    %287 = vmatpush1.bf16.msra.mxu0 %v263
    %288 = vmatprep.subr.bf16.mxu0 0
    %289 = vmatpush1.bf16.msra.mxu0 0
    %290 = vmatprep.subr.bf16.mxu0 0
    %291 = vmatpush1.bf16.msra.mxu0 0
    %292 = vmatprep.subr.bf16.mxu0 0
    %293 = vmatpush1.bf16.msra.mxu0 0
    %294 = vmatprep.subr.bf16.mxu0 0
    %295 = vmatpush1.bf16.msra.mxu0 0
    %296 = vmatprep.subr.bf16.mxu0 0
    %297 = vmatpush1.bf16.msra.mxu0 0
    %298 = vmatprep.subr.bf16.mxu0 0
    %299 = vmatpush1.bf16.msra.mxu0 0
    %300 = vmatprep.subr.bf16.mxu0 0
    %301 = vmatpush1.bf16.msra.mxu0 0
    %302 = vmatprep.subr.bf16.mxu0 0
    %303 = vmatpush1.bf16.msra.mxu0 0
    %304 = vmatprep.mubr.bf16.mxu0 0
    %305 = vmatmul.mubr.bf16.gmra.mrb[0].mxu0 %v207
    %v306 = vpop.f32.mrb[0].mxu0
    %v307 = vadd.f32 0.0, %v306
    %v308 = vpop.f32.mrb[0].mxu0
    %v309 = vpop.f32.mrb[0].mxu0
    %v310 = vpop.f32.mrb[0].mxu0
    %311 = vdwg.mxu0
    %v312 = vadd.f32 %v206, %v307
    %313 = vst [vmem:[#allocation2] sm:$0xff] %v312
    // Predicated region
    $region30: #{tpu_custom_call.1} parent=1 // pred_check
      %p314 = pneg %p55
    $region31: #{tpu_custom_call.1} parent=1 // pred_check_branch
      %316 = sbr.rel (%p314) target = $region33
    $region32: #{tpu_custom_call.1} parent=1 // pred_region
      %v317 = vld [vmem:[#allocation2] sm:$0xff]
      %318 = vst [vmem:[#allocation9] sm:$0xff] %v317
    $region33: #{tpu_custom_call.1} parent=1 // pred_fallthru
      _
    // Predicated region
    $region34: #{tpu_custom_call.1} parent=1 // pred_check
      _
    $region35: #{tpu_custom_call.1} parent=1 // pred_check_branch
      %320 = sbr.rel (0) target = $region37
    $region36: #{tpu_custom_call.1} parent=1 // pred_region
      %s322 = ssub.s32 128, 128
      %323 = vsyncadd [#allocation5], %s322
      %s325 = sshll.u32 [#allocation9], 4
      %s326 = int_to_ptr.vmem [resolvable:$true] %s325
      %328 = dma.vmem_to_hbm [thread:$0]  %s326, 128, %s3, [#allocation5]
    $region37: #{tpu_custom_call.1} parent=1 // pred_fallthru
      _
    // Predicated region
    $region38: #{tpu_custom_call.1} parent=1 // pred_check
      _
    $region39: #{tpu_custom_call.1} parent=1 // pred_check_branch
      %330 = sbr.rel (0) target = $region41
    $region40: #{tpu_custom_call.1} parent=1 // pred_region
      %331 = dma.done [#allocation5], 128
    $region41: #{tpu_custom_call.1} parent=1 // pred_fallthru
      _
    %332 = vsyncpa [#allocation4], 1
    %333 = vsyncpa [#allocation7], 1
    %334 = vsyncpa [#allocation5], 1

</llo_original>
